<compile_context>
chip_gen: v7x
topology: tpu7x:2x2x1
jax: 0.10.0
libtpu: 0.0.40
codegen_flags: <defaults>
</compile_context>

<pallas_src>
import jax
import jax.numpy as jnp
from jax.experimental import pallas as pl
from jax.experimental.pallas import tpu as pltpu


def _reward_model_kernel(x_ref, w1_ref, b1_ref, w2_ref, b2_ref, w3_ref, b3_ref,
                         out_ref):
    """One batch tile: fused quality+diversity heads -> (tb, 2) scores."""
    x = x_ref[...]                                        # (tb, D), compute dtype

    # Layer 1, both heads fused along N: (tb, D) @ (D, 2H) -> f32 (tb, 2H).
    h = jnp.dot(x, w1_ref[...], preferred_element_type=jnp.float32)
    h = jnp.maximum(h + b1_ref[...], 0.0)                 # bias + ReLU in f32 (VPU)

    # Layer 2, block-diagonal fused weight keeps heads independent:
    # (tb, 2H) @ (2H, 2H2) -> f32 (tb, 2H2).
    h = jnp.dot(h.astype(w2_ref.dtype), w2_ref[...],
                preferred_element_type=jnp.float32)
    h = jnp.maximum(h + b2_ref[...], 0.0)

    # Layer 3, block-diagonal (2H2, 2) projection: both logits in one pass.
    logits = jnp.dot(h.astype(w3_ref.dtype), w3_ref[...],
                     preferred_element_type=jnp.float32) + b3_ref[...]

    # Sigmoid: exp + approx reciprocal both run on the (otherwise idle) EUP.
    scores = pl.reciprocal(1.0 + jnp.exp(-logits), approx=True)
    out_ref[...] = scores.astype(out_ref.dtype)


def _round_up(x, m):
    return -(-x // m) * m


def _pick_batch_tile(b_padded, batch_tile):
    """Largest multiple-of-8 divisor of b_padded that is <= the cap.

    The cap also enforces >= 2 grid steps whenever b_padded >= 16 so the
    'parallel' grid axis actually has work to shard across v7x's two
    TensorCores (no-op on v5e/v6e).
    """
    cap = min(batch_tile, b_padded)
    if b_padded >= 16:
        cap = min(cap, b_padded // 2)
    tb = 8
    for t in range(8, cap + 1, 8):
        if b_padded % t == 0:
            tb = t
    return tb


def generative_reward_model(features, params, *, batch_tile=512,
                            compute_dtype=jnp.bfloat16):
    """Pallas forward of GenerativeRewardModel.

    params["quality"] / params["diversity"] are tuples
      (w1 (D,H), b1 (1,H), w2 (H,H2), b2 (1,H2), w3 (1,H2), b3 (1,1)).
    Returns (quality_scores, diversity_scores), each (B, 1) float32.
    """
    B, D = features.shape
    wq1, bq1, wq2, bq2, wq3, bq3 = params["quality"]
    wd1, bd1, wd2, bd2, wd3, bd3 = params["diversity"]
    H = wq1.shape[1]
    H2 = wq2.shape[1]

    # ---- Fuse the two heads' weights (tiny one-time wrapper-side ops). ----
    # Layer 1: concat along the output dim -> one MXU pass with N = 2H.
    w1 = jnp.concatenate([wq1, wd1], axis=1).astype(compute_dtype)        # (D, 2H)
    b1 = jnp.concatenate([bq1, bd1], axis=1).astype(jnp.float32)          # (1, 2H)
    # Layer 2: block-diagonal so the heads stay independent -> N = 2H2.
    w2 = jnp.concatenate(
        [jnp.concatenate([wq2, jnp.zeros_like(wq2)], axis=1),
         jnp.concatenate([jnp.zeros_like(wd2), wd2], axis=1)],
        axis=0).astype(compute_dtype)                                     # (2H, 2H2)
    b2 = jnp.concatenate([bq2, bd2], axis=1).astype(jnp.float32)          # (1, 2H2)
    # Layer 3: block-diagonal (2H2, 2) projection -> both logits in one dot.
    zcol = jnp.zeros((H2, 1), wq3.dtype)
    w3 = jnp.concatenate(
        [jnp.concatenate([wq3.T, zcol], axis=1),
         jnp.concatenate([zcol, wd3.T], axis=1)],
        axis=0).astype(compute_dtype)                                     # (2H2, 2)
    b3 = jnp.concatenate([bq3, bd3], axis=1).astype(jnp.float32)          # (1, 2)

    # ---- Batch tiling: pad rows to a multiple of 8 and pick a tile that
    # divides the padded batch (satisfies the (8,128) block rule, avoids the
    # old "one giant block" fallback) with >= 2 grid steps when possible. ----
    Bp = _round_up(B, 8)
    x = features.astype(compute_dtype)
    if Bp != B:
        x = jnp.pad(x, ((0, Bp - B), (0, 0)))
    tb = _pick_batch_tile(Bp, batch_tile)
    grid = (Bp // tb,)

    def resident(shape):
        # Full-extent block + constant index map: fetched once, VMEM-resident
        # across all batch tiles.
        nd = len(shape)
        return pl.BlockSpec(shape, lambda i: (0,) * nd)

    # ---- VMEM budget / cost hints. ----
    bpe = jnp.dtype(compute_dtype).itemsize
    w_bytes = (D * 2 * H + 2 * H * 2 * H2 + 2 * H2 * 2) * bpe
    b_bytes = (2 * H + 2 * H2 + 2) * 4
    x_bytes = Bp * D * bpe
    o_bytes = Bp * 2 * 4
    # Resident weights/biases (pipeline double-buffers them) + double-buffered
    # feature/output tiles, with 2x headroom; clamped to [32 MiB, 64 MiB] so it
    # is safe on every generation (v7x physical VMEM is 64 MiB).
    vmem_limit = 2 * (2 * (w_bytes + b_bytes) + 2 * (tb * D * bpe + tb * 2 * 4))
    vmem_limit = int(min(64 * 2**20, max(32 * 2**20, vmem_limit)))

    flops = 2 * Bp * (D * 2 * H + 2 * H * 2 * H2 + 2 * H2 * 2)
    cost = pl.CostEstimate(flops=flops, transcendentals=4 * Bp,
                           bytes_accessed=x_bytes + w_bytes + b_bytes + o_bytes)

    out = pl.pallas_call(
        _reward_model_kernel,
        out_shape=jax.ShapeDtypeStruct((Bp, 2), jnp.float32),
        grid_spec=pltpu.PrefetchScalarGridSpec(
            num_scalar_prefetch=0,
            grid=grid,
            in_specs=[
                pl.BlockSpec((tb, D), lambda i: (i, 0)),            # features
                resident((D, 2 * H)), resident((1, 2 * H)),         # fused L1
                resident((2 * H, 2 * H2)), resident((1, 2 * H2)),   # fused L2
                resident((2 * H2, 2)), resident((1, 2)),            # fused L3
            ],
            out_specs=pl.BlockSpec((tb, 2), lambda i: (i, 0)),
        ),
        compiler_params=pltpu.CompilerParams(
            dimension_semantics=("parallel",),     # v7x: shard batch over 2 TCs
            vmem_limit_bytes=vmem_limit),
        cost_estimate=cost,
    )(x, w1, b1, w2, b2, w3, b3)

    out = out[:B]
    return out[:, 0:1], out[:, 1:2]


def _reference(features, params):
    """Pure-JAX f32 reference matching the PyTorch module."""
    def head(p):
        w1, b1, w2, b2, w3, b3 = p
        h = jnp.maximum(features @ w1 + b1, 0.0)
        h = jnp.maximum(h @ w2 + b2, 0.0)
        logit = h @ w3.T + b3
        return jax.nn.sigmoid(logit)
    return head(params["quality"]), head(params["diversity"])


if __name__ == "__main__":
    key = jax.random.PRNGKey(0)
    D, H = 64, 128                 # input_dim, hidden_dim (hidden_dim // 2 = 64)
    H2 = H // 2

    keys = jax.random.split(key, 13)

    def linear_params(kw, kb, fan_in, shape_w, shape_b):
        # PyTorch nn.Linear default init: U(-1/sqrt(fan_in), 1/sqrt(fan_in)).
        bound = 1.0 / float(fan_in) ** 0.5
        w = jax.random.uniform(kw, shape_w, jnp.float32, -bound, bound)
        b = jax.random.uniform(kb, shape_b, jnp.float32, -bound, bound)
        return w, b

    def head_params(ks):
        w1, b1 = linear_params(ks[0], ks[1], D, (D, H), (1, H))
        w2, b2 = linear_params(ks[2], ks[3], H, (H, H2), (1, H2))
        w3, b3 = linear_params(ks[4], ks[5], H2, (1, H2), (1, 1))
        return (w1, b1, w2, b2, w3, b3)

    params = {
        "quality": head_params(keys[1:7]),
        "diversity": head_params(keys[7:13]),
    }

    # bf16 MXU operands vs. f32 reference: scores live in (0, 1), so a bf16
    # scale absolute tolerance is the meaningful bound.
    for B in (8, 20):              # grid=1 case, and padded multi-step case
        features = jax.random.normal(jax.random.fold_in(key, B), (B, D),
                                     dtype=jnp.float32)
        q, d = generative_reward_model(features, params)
        q = jax.block_until_ready(q)
        d = jax.block_until_ready(d)

        q_ref, d_ref = _reference(features, params)
        assert q.shape == (B, 1) and d.shape == (B, 1)
        assert jnp.allclose(q, q_ref, rtol=3e-2, atol=3e-2), ("quality", B, q, q_ref)
        assert jnp.allclose(d, d_ref, rtol=3e-2, atol=3e-2), ("diversity", B, d, d_ref)

    print("KERNEL_OK")
</pallas_src>

<mosaic_0001>
module attributes {stable_mosaic.version = 11 : i64} {
  func.func @_reward_model_kernel(%arg0: i32, %arg1: memref<8x64xbf16, #tpu.memory_space<vmem>>, %arg2: memref<64x256xbf16, #tpu.memory_space<vmem>>, %arg3: memref<1x256xf32, #tpu.memory_space<vmem>>, %arg4: memref<256x128xbf16, #tpu.memory_space<vmem>>, %arg5: memref<1x128xf32, #tpu.memory_space<vmem>>, %arg6: memref<128x2xbf16, #tpu.memory_space<vmem>>, %arg7: memref<1x2xf32, #tpu.memory_space<vmem>>, %arg8: memref<8x2xf32, #tpu.memory_space<vmem>>) attributes {dimension_semantics = [#tpu.dimension_semantics<parallel>], iteration_bounds = array<i64: 1>, scalar_prefetch = 0 : i64, scratch_operands = 0 : i64, tpu.core_type = #tpu.core_type<tc>, window_params = [{transform_indices = @transform_0, window_bounds = array<i64: 8, 64>}, {pipeline_mode = #tpu.pipeline_mode<synchronous>, transform_indices = @transform_1, window_bounds = array<i64: 64, 256>}, {pipeline_mode = #tpu.pipeline_mode<synchronous>, transform_indices = @transform_2, window_bounds = array<i64: 1, 256>}, {pipeline_mode = #tpu.pipeline_mode<synchronous>, transform_indices = @transform_3, window_bounds = array<i64: 256, 128>}, {pipeline_mode = #tpu.pipeline_mode<synchronous>, transform_indices = @transform_4, window_bounds = array<i64: 1, 128>}, {pipeline_mode = #tpu.pipeline_mode<synchronous>, transform_indices = @transform_5, window_bounds = array<i64: 128, 2>}, {pipeline_mode = #tpu.pipeline_mode<synchronous>, transform_indices = @transform_6, window_bounds = array<i64: 1, 2>}, {transform_indices = @transform_7, window_bounds = array<i64: 8, 2>}]} {
    %c0 = arith.constant 0 : index
    %c0_0 = arith.constant 0 : index
    %0 = vector.load %arg1[%c0, %c0_0] : memref<8x64xbf16, #tpu.memory_space<vmem>>, vector<8x64xbf16>
    %c0_1 = arith.constant 0 : index
    %c0_2 = arith.constant 0 : index
    %1 = vector.load %arg2[%c0_1, %c0_2] : memref<64x256xbf16, #tpu.memory_space<vmem>>, vector<64x256xbf16>
    %cst = arith.constant dense<0.000000e+00> : vector<8x256xf32>
    %2 = tpu.matmul %0, %1, %cst {dimension_numbers = #tpu.dot_dimension_numbers<[1], [0], [0], [1], [0, 0, 1, 1], [], []>} : vector<8x64xbf16>, vector<64x256xbf16>, vector<8x256xf32> -> vector<8x256xf32>
    %c0_3 = arith.constant 0 : index
    %c0_4 = arith.constant 0 : index
    %3 = vector.load %arg3[%c0_3, %c0_4] : memref<1x256xf32, #tpu.memory_space<vmem>>, vector<1x256xf32>
    %4 = vector.broadcast %3 : vector<1x256xf32> to vector<8x256xf32>
    %5 = arith.addf %2, %4 : vector<8x256xf32>
    %cst_5 = arith.constant 0.000000e+00 : f32
    %6 = vector.broadcast %cst_5 : f32 to vector<8x256xf32>
    %7 = arith.maximumf %5, %6 : vector<8x256xf32>
    %8 = arith.truncf %7 : vector<8x256xf32> to vector<8x256xbf16>
    %c0_6 = arith.constant 0 : index
    %c0_7 = arith.constant 0 : index
    %9 = vector.load %arg4[%c0_6, %c0_7] : memref<256x128xbf16, #tpu.memory_space<vmem>>, vector<256x128xbf16>
    %cst_8 = arith.constant dense<0.000000e+00> : vector<8x128xf32>
    %10 = tpu.matmul %8, %9, %cst_8 {dimension_numbers = #tpu.dot_dimension_numbers<[1], [0], [0], [1], [0, 0, 1, 1], [], []>} : vector<8x256xbf16>, vector<256x128xbf16>, vector<8x128xf32> -> vector<8x128xf32>
    %c0_9 = arith.constant 0 : index
    %c0_10 = arith.constant 0 : index
    %11 = vector.load %arg5[%c0_9, %c0_10] : memref<1x128xf32, #tpu.memory_space<vmem>>, vector<1x128xf32>
    %12 = vector.broadcast %11 : vector<1x128xf32> to vector<8x128xf32>
    %13 = arith.addf %10, %12 : vector<8x128xf32>
    %cst_11 = arith.constant 0.000000e+00 : f32
    %14 = vector.broadcast %cst_11 : f32 to vector<8x128xf32>
    %15 = arith.maximumf %13, %14 : vector<8x128xf32>
    %16 = arith.truncf %15 : vector<8x128xf32> to vector<8x128xbf16>
    %c0_12 = arith.constant 0 : index
    %c0_13 = arith.constant 0 : index
    %17 = vector.load %arg6[%c0_12, %c0_13] : memref<128x2xbf16, #tpu.memory_space<vmem>>, vector<128x2xbf16>
    %cst_14 = arith.constant dense<0.000000e+00> : vector<8x2xf32>
    %18 = tpu.matmul %16, %17, %cst_14 {dimension_numbers = #tpu.dot_dimension_numbers<[1], [0], [0], [1], [0, 0, 1, 1], [], []>} : vector<8x128xbf16>, vector<128x2xbf16>, vector<8x2xf32> -> vector<8x2xf32>
    %c0_15 = arith.constant 0 : index
    %c0_16 = arith.constant 0 : index
    %19 = vector.load %arg7[%c0_15, %c0_16] : memref<1x2xf32, #tpu.memory_space<vmem>>, vector<1x2xf32>
    %20 = vector.broadcast %19 : vector<1x2xf32> to vector<8x2xf32>
    %21 = arith.addf %18, %20 : vector<8x2xf32>
    %cst_17 = arith.constant 0.000000e+00 : f32
    %22 = vector.broadcast %cst_17 : f32 to vector<8x2xf32>
    %23 = arith.subf %22, %21 : vector<8x2xf32>
    %24 = math.exp %23 : vector<8x2xf32>
    %cst_18 = arith.constant 1.000000e+00 : f32
    %25 = vector.broadcast %cst_18 : f32 to vector<8x2xf32>
    %26 = arith.addf %25, %24 : vector<8x2xf32>
    %27 = tpu.reciprocal %26 {approx = true} : vector<8x2xf32> -> vector<8x2xf32>
    %c0_19 = arith.constant 0 : index
    %c0_20 = arith.constant 0 : index
    %28 = vector.load %arg8[%c0_19, %c0_20] : memref<8x2xf32, #tpu.memory_space<vmem>>, vector<8x2xf32>
    tpu.vector_store %arg8[%c0_19, %c0_20], %27 {strides = array<i32>} : memref<8x2xf32, #tpu.memory_space<vmem>>, vector<8x2xf32>,
    return
  }
  func.func @transform_0(%arg0: i32) -> (i32, i32) {
    %c0_i32 = arith.constant 0 : i32
    %c0_i32_0 = arith.constant 0 : i32
    return %arg0, %c0_i32 : i32, i32
  }
  func.func @transform_1(%arg0: i32) -> (i32, i32) {
    %c0_i32 = arith.constant 0 : i32
    %c0_i32_0 = arith.constant 0 : i32
    %c0_i32_1 = arith.constant 0 : i32
    return %c0_i32, %c0_i32_0 : i32, i32
  }
  func.func @transform_2(%arg0: i32) -> (i32, i32) {
    %c0_i32 = arith.constant 0 : i32
    %c0_i32_0 = arith.constant 0 : i32
    %c0_i32_1 = arith.constant 0 : i32
    return %c0_i32, %c0_i32_0 : i32, i32
  }
  func.func @transform_3(%arg0: i32) -> (i32, i32) {
    %c0_i32 = arith.constant 0 : i32
    %c0_i32_0 = arith.constant 0 : i32
    %c0_i32_1 = arith.constant 0 : i32
    return %c0_i32, %c0_i32_0 : i32, i32
  }
  func.func @transform_4(%arg0: i32) -> (i32, i32) {
    %c0_i32 = arith.constant 0 : i32
    %c0_i32_0 = arith.constant 0 : i32
    %c0_i32_1 = arith.constant 0 : i32
    return %c0_i32, %c0_i32_0 : i32, i32
  }
  func.func @transform_5(%arg0: i32) -> (i32, i32) {
    %c0_i32 = arith.constant 0 : i32
    %c0_i32_0 = arith.constant 0 : i32
    %c0_i32_1 = arith.constant 0 : i32
    return %c0_i32, %c0_i32_0 : i32, i32
  }
  func.func @transform_6(%arg0: i32) -> (i32, i32) {
    %c0_i32 = arith.constant 0 : i32
    %c0_i32_0 = arith.constant 0 : i32
    %c0_i32_1 = arith.constant 0 : i32
    return %c0_i32, %c0_i32_0 : i32, i32
  }
  func.func @transform_7(%arg0: i32) -> (i32, i32) {
    %c0_i32 = arith.constant 0 : i32
    %c0_i32_0 = arith.constant 0 : i32
    return %arg0, %c0_i32 : i32, i32
  }
}

</mosaic_0001>

<llo_original>
// kernel: tpu_custom_call.1
$region0: #{tpu_custom_call.1}
  #allocation0 [shape = 'u32[]', space=smem, size = 0x4, offset = 0x4, fixed_abs, tag = 'smem constant byte address 0x4 - core index']
  #allocation1 [shape = 'u32[144,128]{1,0:T(1,128)}', space=vmem, size = 0x12000, scoped, tag = 'internal scratch']
  %s0 = inlined_call_operand.vmem [shape: bf16[8,64], index: 0, kind: input, shape index: {}]
  %s1 = inlined_call_operand.vmem [shape: bf16[64,256], index: 1, kind: input, shape index: {}]
  %s2 = inlined_call_operand.vmem [shape: f32[1,256], index: 2, kind: input, shape index: {}]
  %s3 = inlined_call_operand.hbm [shape: bf16[256,128], index: 3, kind: input, shape index: {}]
  %s4 = inlined_call_operand.vmem [shape: f32[1,128], index: 4, kind: input, shape index: {}]
  %s5 = inlined_call_operand.vmem [shape: bf16[128,2], index: 5, kind: input, shape index: {}]
  %s6 = inlined_call_operand.vmem [shape: f32[1,2], index: 6, kind: input, shape index: {}]
  %s7 = inlined_call_operand.vmem [shape: f32[8,2], index: 7, kind: output, shape index: {}]
  %s8 = sld [smem:[#allocation0]]
  $region42: #{tpu_custom_call.1} parent=0
    _
  %s10 = ssub.s32 1, %s8
  %s11 = scalar_select 0, %s10, %s8
  $region1: #{tpu_custom_call.1} parent=0
    #allocation2 [shape = 'u8[65536]{0}', space=vmem, size = 0x10000, scoped, tag = 'input window, operand 3, single buffered']
    #allocation3 [shape = 's32[1]{0}', space=sflag, size = 0x4, scoped, tag = 'scoped memory for tpu_custom_call.1']
    %12 = vsyncpa [#allocation3], 0
    // Predicated region
    $region2: #{tpu_custom_call.1} parent=1 // pred_check
      _
    $region3: #{tpu_custom_call.1} parent=1 // pred_check_branch
      %14 = sbr.rel (0) target = $region5
    $region4: #{tpu_custom_call.1} parent=1 // pred_region
      _
    $region5: #{tpu_custom_call.1} parent=1 // pred_fallthru
      _
    // Predicated region
    $region6: #{tpu_custom_call.1} parent=1 // pred_check
      _
    $region7: #{tpu_custom_call.1} parent=1 // pred_check_branch
      %16 = sbr.rel (0) target = $region9
    $region8: #{tpu_custom_call.1} parent=1 // pred_region
      _
    $region9: #{tpu_custom_call.1} parent=1 // pred_fallthru
      _
    // Predicated region
    $region10: #{tpu_custom_call.1} parent=1 // pred_check
      _
    $region11: #{tpu_custom_call.1} parent=1 // pred_check_branch
      %18 = sbr.rel (0) target = $region13
    $region12: #{tpu_custom_call.1} parent=1 // pred_region
      _
    $region13: #{tpu_custom_call.1} parent=1 // pred_fallthru
      _
    // Predicated region
    $region14: #{tpu_custom_call.1} parent=1 // pred_check
      _
    $region15: #{tpu_custom_call.1} parent=1 // pred_check_branch
      %20 = sbr.rel (0) target = $region17
    $region16: #{tpu_custom_call.1} parent=1 // pred_region
      %s22 = ssub.s32 2048, 2048
      %23 = vsyncadd [#allocation3], %s22
      %s24 = sshll.u32 [#allocation2], 4
      %s25 = int_to_ptr.vmem [resolvable:$true] %s24
      %30 = dma.hbm_to_vmem [thread:$0]  %s3, 2048, %s25, [#allocation3], 64, 64, 4
    $region17: #{tpu_custom_call.1} parent=1 // pred_fallthru
      _
    // Predicated region
    $region18: #{tpu_custom_call.1} parent=1 // pred_check
      _
    $region19: #{tpu_custom_call.1} parent=1 // pred_check_branch
      %32 = sbr.rel (0) target = $region21
    $region20: #{tpu_custom_call.1} parent=1 // pred_region
      _
    $region21: #{tpu_custom_call.1} parent=1 // pred_fallthru
      _
    // Predicated region
    $region22: #{tpu_custom_call.1} parent=1 // pred_check
      _
    $region23: #{tpu_custom_call.1} parent=1 // pred_check_branch
      %34 = sbr.rel (0) target = $region25
    $region24: #{tpu_custom_call.1} parent=1 // pred_region
      _
    $region25: #{tpu_custom_call.1} parent=1 // pred_fallthru
      _
    // Predicated region
    $region26: #{tpu_custom_call.1} parent=1 // pred_check
      _
    $region27: #{tpu_custom_call.1} parent=1 // pred_check_branch
      %36 = sbr.rel (0) target = $region29
    $region28: #{tpu_custom_call.1} parent=1 // pred_region
      _
    $region29: #{tpu_custom_call.1} parent=1 // pred_fallthru
      _
    // Predicated region
    $region30: #{tpu_custom_call.1} parent=1 // pred_check
      _
    $region31: #{tpu_custom_call.1} parent=1 // pred_check_branch
      %38 = sbr.rel (0) target = $region33
    $region32: #{tpu_custom_call.1} parent=1 // pred_region
      %39 = dma.done [#allocation3], 2048
    $region33: #{tpu_custom_call.1} parent=1 // pred_fallthru
      _
    %v41 = vld [vmem:[%s0] sm:$0xf]
    %v42 = vld [vmem:[%s1] sm:$0xff]
    %v43 = vld [vmem:[%s1 + $0x8] sm:$0xff]
    %v44 = vld [vmem:[%s1 + $0x10] sm:$0xff]
    %v45 = vld [vmem:[%s1 + $0x18] sm:$0xff]
    %v46 = vld [vmem:[%s1 + $0x20] sm:$0xff]
    %v47 = vld [vmem:[%s1 + $0x28] sm:$0xff]
    %v48 = vld [vmem:[%s1 + $0x30] sm:$0xff]
    %v49 = vld [vmem:[%s1 + $0x38] sm:$0xff]
    %v50 = vld [vmem:[%s2] sm:$0x3]
    %v52 = vlaneseq
    %v53 = vshrl.u32 %v52, 7
    %v54 = vsub.s32 0, %v53
    %v55 = vrot.slane %v50, %v54
    %v56 = vlaneseq
    %v57 = vshrl.u32 %v56, 7
    %v58 = vsub.s32 1, %v57
    %v59 = vrot.slane %v50, %v58
    %v70 = vunpack.c.l.b16 %v42
    %v71 = vunpack.c.h.b16 %v42
    %v72 = vunpack.c.l.b16 %v43
    %v73 = vunpack.c.h.b16 %v43
    %v74 = vunpack.c.l.b16 %v44
    %v75 = vunpack.c.h.b16 %v44
    %v76 = vunpack.c.l.b16 %v45
    %v77 = vunpack.c.h.b16 %v45
    %v78 = vunpack.c.l.b16 %v46
    %v79 = vunpack.c.h.b16 %v46
    %v80 = vunpack.c.l.b16 %v47
    %v81 = vunpack.c.h.b16 %v47
    %v82 = vunpack.c.l.b16 %v48
    %v83 = vunpack.c.h.b16 %v48
    %v84 = vunpack.c.l.b16 %v49
    %v85 = vunpack.c.h.b16 %v49
    %v86 = vpack.c.b16 %v72, %v70
    %v87 = vpack.c.b16 %v73, %v71
    %v88 = vpack.c.b16 %v76, %v74
    %v89 = vpack.c.b16 %v77, %v75
    %v90 = vpack.c.b16 %v80, %v78
    %v91 = vpack.c.b16 %v81, %v79
    %v92 = vpack.c.b16 %v84, %v82
    %v93 = vpack.c.b16 %v85, %v83
    %vm102 = vcmask 523264
    %v104 = vsel %vm102, %v41, 0
    %106 = vmatprep.subr.bf16.mxu0 %v87
    %107 = vmatpush1.bf16.msra.mxu0 %v86
    %108 = vmatprep.subr.bf16.mxu0 %v89
    %109 = vmatpush1.bf16.msra.mxu0 %v88
    %110 = vmatprep.subr.bf16.mxu0 %v91
    %111 = vmatpush1.bf16.msra.mxu0 %v90
    %112 = vmatprep.subr.bf16.mxu0 %v93
    %113 = vmatpush1.bf16.msra.mxu0 %v92
    %114 = vmatprep.subr.bf16.mxu0 0
    %115 = vmatpush1.bf16.msra.mxu0 0
    %116 = vmatprep.subr.bf16.mxu0 0
    %117 = vmatpush1.bf16.msra.mxu0 0
    %118 = vmatprep.subr.bf16.mxu0 0
    %119 = vmatpush1.bf16.msra.mxu0 0
    %120 = vmatprep.subr.bf16.mxu0 0
    %121 = vmatpush1.bf16.msra.mxu0 0
    %122 = vmatprep.subr.bf16.mxu0 0
    %123 = vmatpush1.bf16.msra.mxu0 0
    %124 = vmatprep.subr.bf16.mxu0 0
    %125 = vmatpush1.bf16.msra.mxu0 0
    %126 = vmatprep.subr.bf16.mxu0 0
    %127 = vmatpush1.bf16.msra.mxu0 0
    %128 = vmatprep.subr.bf16.mxu0 0
    %129 = vmatpush1.bf16.msra.mxu0 0
    %130 = vmatprep.subr.bf16.mxu0 0
    %131 = vmatpush1.bf16.msra.mxu0 0
    %132 = vmatprep.subr.bf16.mxu0 0
    %133 = vmatpush1.bf16.msra.mxu0 0
    %134 = vmatprep.subr.bf16.mxu0 0
    %135 = vmatpush1.bf16.msra.mxu0 0
    %136 = vmatprep.subr.bf16.mxu0 0
    %137 = vmatpush1.bf16.msra.mxu0 0
    %138 = vmatprep.mubr.bf16.mxu0 0
    %139 = vmatmul.mubr.bf16.gmra.mrb[0].mxu0 %v104
    %v140 = vpop.f32.mrb[0].mxu0
    %v141 = vadd.f32 %v55, %v140
    %v142 = vpop.f32.mrb[0].mxu0
    %v143 = vadd.f32 %v59, %v142
    %v144 = vpop.f32.mrb[0].mxu0
    %v145 = vpop.f32.mrb[0].mxu0
    %146 = vdwg.mxu0
    %v147 = vmax.f32 %v141, 0.0
    %v148 = vmax.f32 %v143, 0.0
    %v149 = vpack.c.bf16 %v147, %v147
    %v150 = vpack.c.bf16 %v148, %v148
    %v151 = vld [vmem:[#allocation2] sm:$0xf]
    %v152 = vld [vmem:[#allocation2 + $0x4] sm:$0xf]
    %v153 = vld [vmem:[#allocation2 + $0x8] sm:$0xf]
    %v154 = vld [vmem:[#allocation2 + $0xc] sm:$0xf]
    %v155 = vld [vmem:[#allocation2 + $0x10] sm:$0xf]
    %v156 = vld [vmem:[#allocation2 + $0x14] sm:$0xf]
    %v157 = vld [vmem:[#allocation2 + $0x18] sm:$0xf]
    %v158 = vld [vmem:[#allocation2 + $0x1c] sm:$0xf]
    %v159 = vld [vmem:[#allocation2 + $0x20] sm:$0xf]
    %v160 = vld [vmem:[#allocation2 + $0x24] sm:$0xf]
    %v161 = vld [vmem:[#allocation2 + $0x28] sm:$0xf]
    %v162 = vld [vmem:[#allocation2 + $0x2c] sm:$0xf]
    %v163 = vld [vmem:[#allocation2 + $0x30] sm:$0xf]
    %v164 = vld [vmem:[#allocation2 + $0x34] sm:$0xf]
    %v165 = vld [vmem:[#allocation2 + $0x38] sm:$0xf]
    %v166 = vld [vmem:[#allocation2 + $0x3c] sm:$0xf]
    %v167 = vld [vmem:[#allocation2 + $0x40] sm:$0xf]
    %v168 = vld [vmem:[#allocation2 + $0x44] sm:$0xf]
    %v169 = vld [vmem:[#allocation2 + $0x48] sm:$0xf]
    %v170 = vld [vmem:[#allocation2 + $0x4c] sm:$0xf]
    %v171 = vld [vmem:[#allocation2 + $0x50] sm:$0xf]
    %v172 = vld [vmem:[#allocation2 + $0x54] sm:$0xf]
    %v173 = vld [vmem:[#allocation2 + $0x58] sm:$0xf]
    %v174 = vld [vmem:[#allocation2 + $0x5c] sm:$0xf]
    %v175 = vld [vmem:[#allocation2 + $0x60] sm:$0xf]
    %v176 = vld [vmem:[#allocation2 + $0x64] sm:$0xf]
    %v177 = vld [vmem:[#allocation2 + $0x68] sm:$0xf]
    %v178 = vld [vmem:[#allocation2 + $0x6c] sm:$0xf]
    %v179 = vld [vmem:[#allocation2 + $0x70] sm:$0xf]
    %v180 = vld [vmem:[#allocation2 + $0x74] sm:$0xf]
    %v181 = vld [vmem:[#allocation2 + $0x78] sm:$0xf]
    %v182 = vld [vmem:[#allocation2 + $0x7c] sm:$0xf]
    %v183 = vld [vmem:[%s4] sm:$0x1]
    %v185 = vlaneseq
    %v186 = vshrl.u32 %v185, 7
    %v187 = vsub.s32 0, %v186
    %v188 = vrot.slane %v183, %v187
    %v222 = vunpack.c.l.b16 %v151
    %v223 = vunpack.c.l.b16 %v152
    %v224 = vunpack.c.l.b16 %v153
    %v225 = vunpack.c.l.b16 %v154
    %v226 = vunpack.c.l.b16 %v155
    %v227 = vunpack.c.l.b16 %v156
    %v228 = vunpack.c.l.b16 %v157
    %v229 = vunpack.c.l.b16 %v158
    %v230 = vunpack.c.l.b16 %v159
    %v231 = vunpack.c.l.b16 %v160
    %v232 = vunpack.c.l.b16 %v161
    %v233 = vunpack.c.l.b16 %v162
    %v234 = vunpack.c.l.b16 %v163
    %v235 = vunpack.c.l.b16 %v164
    %v236 = vunpack.c.l.b16 %v165
    %v237 = vunpack.c.l.b16 %v166
    %v238 = vunpack.c.l.b16 %v167
    %v239 = vunpack.c.l.b16 %v168
    %v240 = vunpack.c.l.b16 %v169
    %v241 = vunpack.c.l.b16 %v170
    %v242 = vunpack.c.l.b16 %v171
    %v243 = vunpack.c.l.b16 %v172
    %v244 = vunpack.c.l.b16 %v173
    %v245 = vunpack.c.l.b16 %v174
    %v246 = vunpack.c.l.b16 %v175
    %v247 = vunpack.c.l.b16 %v176
    %v248 = vunpack.c.l.b16 %v177
    %v249 = vunpack.c.l.b16 %v178
    %v250 = vunpack.c.l.b16 %v179
    %v251 = vunpack.c.l.b16 %v180
    %v252 = vunpack.c.l.b16 %v181
    %v253 = vunpack.c.l.b16 %v182
    %v254 = vpack.c.b16 %v223, %v222
    %v255 = vpack.c.b16 %v225, %v224
    %v256 = vpack.c.b16 %v227, %v226
    %v257 = vpack.c.b16 %v229, %v228
    %v258 = vpack.c.b16 %v231, %v230
    %v259 = vpack.c.b16 %v233, %v232
    %v260 = vpack.c.b16 %v235, %v234
    %v261 = vpack.c.b16 %v237, %v236
    %v262 = vpack.c.b16 %v239, %v238
    %v263 = vpack.c.b16 %v241, %v240
    %v264 = vpack.c.b16 %v243, %v242
    %v265 = vpack.c.b16 %v245, %v244
    %v266 = vpack.c.b16 %v247, %v246
    %v267 = vpack.c.b16 %v249, %v248
    %v268 = vpack.c.b16 %v251, %v250
    %v269 = vpack.c.b16 %v253, %v252
    %286 = vmatprep.subr.bf16.mxu0 0
    %287 = vmatpush1.bf16.msra.mxu0 %v254
    %288 = vmatprep.subr.bf16.mxu0 0
    %289 = vmatpush1.bf16.msra.mxu0 %v255
    %290 = vmatprep.subr.bf16.mxu0 0
    %291 = vmatpush1.bf16.msra.mxu0 %v256
    %292 = vmatprep.subr.bf16.mxu0 0
    %293 = vmatpush1.bf16.msra.mxu0 %v257
    %294 = vmatprep.subr.bf16.mxu0 0
    %295 = vmatpush1.bf16.msra.mxu0 %v258
    %296 = vmatprep.subr.bf16.mxu0 0
    %297 = vmatpush1.bf16.msra.mxu0 %v259
    %298 = vmatprep.subr.bf16.mxu0 0
    %299 = vmatpush1.bf16.msra.mxu0 %v260
    %300 = vmatprep.subr.bf16.mxu0 0
    %301 = vmatpush1.bf16.msra.mxu0 %v261
    %302 = vmatprep.subr.bf16.mxu0 0
    %303 = vmatpush1.bf16.msra.mxu0 %v262
    %304 = vmatprep.subr.bf16.mxu0 0
    %305 = vmatpush1.bf16.msra.mxu0 %v263
    %306 = vmatprep.subr.bf16.mxu0 0
    %307 = vmatpush1.bf16.msra.mxu0 %v264
    %308 = vmatprep.subr.bf16.mxu0 0
    %309 = vmatpush1.bf16.msra.mxu0 %v265
    %310 = vmatprep.subr.bf16.mxu0 0
    %311 = vmatpush1.bf16.msra.mxu0 %v266
    %312 = vmatprep.subr.bf16.mxu0 0
    %313 = vmatpush1.bf16.msra.mxu0 %v267
    %314 = vmatprep.subr.bf16.mxu0 0
    %315 = vmatpush1.bf16.msra.mxu0 %v268
    %316 = vmatprep.subr.bf16.mxu0 0
    %317 = vmatpush1.bf16.msra.mxu0 %v269
    %318 = vmatprep.mubr.bf16.mxu0 %v150
    %319 = vmatmul.mubr.bf16.gmra.mrb[0].mxu0 %v149
    %v320 = vpop.f32.mrb[0].mxu0
    %v321 = vadd.f32 %v188, %v320
    %v322 = vpop.f32.mrb[0].mxu0
    %v323 = vpop.f32.mrb[0].mxu0
    %v324 = vpop.f32.mrb[0].mxu0
    %325 = vdwg.mxu0
    %v326 = vmax.f32 %v321, 0.0
    %v327 = vpack.c.bf16 %v326, %v326
    %v328 = vld [vmem:[%s5] sm:$0xf]
    %v329 = vld [vmem:[%s5 + $0x4] sm:$0xf]
    %v330 = vld [vmem:[%s5 + $0x8] sm:$0xf]
    %v331 = vld [vmem:[%s5 + $0xc] sm:$0xf]
    %v332 = vld [vmem:[%s5 + $0x10] sm:$0xf]
    %v333 = vld [vmem:[%s5 + $0x14] sm:$0xf]
    %v334 = vld [vmem:[%s5 + $0x18] sm:$0xf]
    %v335 = vld [vmem:[%s5 + $0x1c] sm:$0xf]
    %v336 = vld [vmem:[%s5 + $0x20] sm:$0xf]
    %v337 = vld [vmem:[%s5 + $0x24] sm:$0xf]
    %v338 = vld [vmem:[%s5 + $0x28] sm:$0xf]
    %v339 = vld [vmem:[%s5 + $0x2c] sm:$0xf]
    %v340 = vld [vmem:[%s5 + $0x30] sm:$0xf]
    %v341 = vld [vmem:[%s5 + $0x34] sm:$0xf]
    %v342 = vld [vmem:[%s5 + $0x38] sm:$0xf]
    %v343 = vld [vmem:[%s5 + $0x3c] sm:$0xf]
    %v344 = vld [vmem:[%s6] sm:$0x1]
    %v346 = vlaneseq
    %v347 = vshrl.u32 %v346, 7
    %v348 = vsub.s32 0, %v347
    %v349 = vrot.slane %v344, %v348
    %v367 = vunpack.c.l.b16 %v328
    %v368 = vunpack.c.l.b16 %v329
    %v369 = vunpack.c.l.b16 %v330
    %v370 = vunpack.c.l.b16 %v331
    %v371 = vunpack.c.l.b16 %v332
    %v372 = vunpack.c.l.b16 %v333
    %v373 = vunpack.c.l.b16 %v334
    %v374 = vunpack.c.l.b16 %v335
    %v375 = vunpack.c.l.b16 %v336
    %v376 = vunpack.c.l.b16 %v337
    %v377 = vunpack.c.l.b16 %v338
    %v378 = vunpack.c.l.b16 %v339
    %v379 = vunpack.c.l.b16 %v340
    %v380 = vunpack.c.l.b16 %v341
    %v381 = vunpack.c.l.b16 %v342
    %v382 = vunpack.c.l.b16 %v343
    %v383 = vpack.c.b16 %v368, %v367
    %v384 = vpack.c.b16 %v370, %v369
    %v385 = vpack.c.b16 %v372, %v371
    %v386 = vpack.c.b16 %v374, %v373
    %v387 = vpack.c.b16 %v376, %v375
    %v388 = vpack.c.b16 %v378, %v377
    %v389 = vpack.c.b16 %v380, %v379
    %v390 = vpack.c.b16 %v382, %v381
    %399 = vmatprep.subr.bf16.mxu0 0
    %400 = vmatpush1.bf16.msra.mxu0 %v383
    %401 = vmatprep.subr.bf16.mxu0 0
    %402 = vmatpush1.bf16.msra.mxu0 %v384
    %403 = vmatprep.subr.bf16.mxu0 0
    %404 = vmatpush1.bf16.msra.mxu0 %v385
    %405 = vmatprep.subr.bf16.mxu0 0
    %406 = vmatpush1.bf16.msra.mxu0 %v386
    %407 = vmatprep.subr.bf16.mxu0 0
    %408 = vmatpush1.bf16.msra.mxu0 %v387
    %409 = vmatprep.subr.bf16.mxu0 0
    %410 = vmatpush1.bf16.msra.mxu0 %v388
    %411 = vmatprep.subr.bf16.mxu0 0
    %412 = vmatpush1.bf16.msra.mxu0 %v389
    %413 = vmatprep.subr.bf16.mxu0 0
    %414 = vmatpush1.bf16.msra.mxu0 %v390
    %415 = vmatprep.subr.bf16.mxu0 0
    %416 = vmatpush1.bf16.msra.mxu0 0
    %417 = vmatprep.subr.bf16.mxu0 0
    %418 = vmatpush1.bf16.msra.mxu0 0
    %419 = vmatprep.subr.bf16.mxu0 0
    %420 = vmatpush1.bf16.msra.mxu0 0
    %421 = vmatprep.subr.bf16.mxu0 0
    %422 = vmatpush1.bf16.msra.mxu0 0
    %423 = vmatprep.subr.bf16.mxu0 0
    %424 = vmatpush1.bf16.msra.mxu0 0
    %425 = vmatprep.subr.bf16.mxu0 0
    %426 = vmatpush1.bf16.msra.mxu0 0
    %427 = vmatprep.subr.bf16.mxu0 0
    %428 = vmatpush1.bf16.msra.mxu0 0
    %429 = vmatprep.subr.bf16.mxu0 0
    %430 = vmatpush1.bf16.msra.mxu0 0
    %431 = vmatprep.mubr.bf16.mxu0 0
    %432 = vmatmul.mubr.bf16.gmra.mrb[0].mxu0 %v327
    %v433 = vpop.f32.mrb[0].mxu0
    %v434 = vadd.f32 %v349, %v433
    %v435 = vpop.f32.mrb[0].mxu0
    %v436 = vpop.f32.mrb[0].mxu0
    %v437 = vpop.f32.mrb[0].mxu0
    %438 = vdwg.mxu0
    %v439 = vsub.f32 0.0, %v434
    %v440 = vmul.f32 %v439, 1.442695
    %v441 = vpow.pop %v440
    %v442 = vadd.f32 %v441, 1.0
    %v443 = vrcp.pop %v442
    %vm444 = vcmask 15360
    %445 = vst.msk [vmem:[%s7] sm:$0xff] %vm444, %v443
    // Predicated region
    $region34: #{tpu_custom_call.1} parent=1 // pred_check
      _
    $region35: #{tpu_custom_call.1} parent=1 // pred_check_branch
      %447 = sbr.rel (0) target = $region37
    $region36: #{tpu_custom_call.1} parent=1 // pred_region
      _
    $region37: #{tpu_custom_call.1} parent=1 // pred_fallthru
      _
    // Predicated region
    $region38: #{tpu_custom_call.1} parent=1 // pred_check
      _
    $region39: #{tpu_custom_call.1} parent=1 // pred_check_branch
      %449 = sbr.rel (0) target = $region41
    $region40: #{tpu_custom_call.1} parent=1 // pred_region
      _
    $region41: #{tpu_custom_call.1} parent=1 // pred_fallthru
      _
    %450 = vsyncpa [#allocation3], 1

</llo_original>
